<compile_context>
chip_gen: v6e
topology: v6e:2x2x1
jax: 0.10.0
libtpu: 0.0.40
codegen_flags: <defaults>
</compile_context>

<pallas_src>
import functools
import math

import jax
import jax.numpy as jnp
from jax.experimental import pallas as pl
from jax.experimental.pallas import tpu as pltpu

_LANE = 128
_NEG_INF = -1e30  # finite "minus infinity" for masked softmax columns


def _round_up(x, m):
    return ((x + m - 1) // m) * m


# --------------------------------------------------------------------------
# Kernel: one batch tile of the fused MLP + softmax.
# --------------------------------------------------------------------------
def policy_kernel(x_ref, w1_ref, b1_ref, w2_ref, b2_ref, w3_ref, b3_ref, out_ref):
    cdt = w1_ref.dtype  # compute dtype of the matmul inputs (f32 or bf16)

    x = x_ref[...]  # already cast to cdt by the wrapper (no double cast)

    # dense1 + ReLU  (MXU matmul, f32 accumulate)
    h1 = jnp.dot(x, w1_ref[...], preferred_element_type=jnp.float32) + b1_ref[...]
    h1 = jnp.maximum(h1, 0.0).astype(cdt)

    # dense2 + ReLU
    h2 = jnp.dot(h1, w2_ref[...], preferred_element_type=jnp.float32) + b2_ref[...]
    h2 = jnp.maximum(h2, 0.0).astype(cdt)

    # head; padded action columns carry a -1e30 bias -> softmax weight 0
    logits = jnp.dot(h2, w3_ref[...], preferred_element_type=jnp.float32) + b3_ref[...]

    # numerically stable softmax over the last axis (dim=1)
    m = jnp.max(logits, axis=-1, keepdims=True)
    e = jnp.exp(logits - m)
    denom = jnp.sum(e, axis=-1, keepdims=True)
    out_ref[...] = (e * pl.reciprocal(denom, approx=True)).astype(out_ref.dtype)


# --------------------------------------------------------------------------
# Parameters
# --------------------------------------------------------------------------
def xavier_uniform(key, fan_in, fan_out):
    # torch.nn.init.xavier_uniform_ on a [out, in] Linear weight; returned
    # already transposed to [in, out] so the kernel does plain x @ W.
    bound = math.sqrt(6.0 / (fan_in + fan_out))
    w = jax.random.uniform(key, (fan_out, fan_in), jnp.float32, -bound, bound)
    return w.T  # [in, out]


def init_policy_params(key, state_size, action_size, hidden_size):
    """Unpadded params matching the PyTorch module (weights as [in, out])."""
    k1, k2, k3 = jax.random.split(key, 3)
    w1 = xavier_uniform(k1, state_size, hidden_size)    # [S, H]
    w2 = xavier_uniform(k2, hidden_size, hidden_size)   # [H, H]
    w3 = xavier_uniform(k3, hidden_size, action_size)   # [H, A]
    z = lambda n: jnp.zeros((n,), jnp.float32)
    return (w1, z(hidden_size), w2, z(hidden_size), w3, z(action_size))


def pad_policy_params(params):
    """Pad once at init to lane-dense (multiple-of-128) feature dims."""
    w1, b1, w2, b2, w3, b3 = params
    S, H = w1.shape
    A = w3.shape[1]
    Hp = _round_up(H, _LANE)
    Ap = _round_up(A, _LANE)
    W1 = jnp.zeros((S, Hp), jnp.float32).at[:, :H].set(w1)
    B1 = jnp.zeros((1, Hp), jnp.float32).at[:, :H].set(b1.reshape(1, H))
    W2 = jnp.zeros((Hp, Hp), jnp.float32).at[:H, :H].set(w2)
    B2 = jnp.zeros((1, Hp), jnp.float32).at[:, :H].set(b2.reshape(1, H))
    W3 = jnp.zeros((Hp, Ap), jnp.float32).at[:H, :A].set(w3)
    # Padded action columns: large negative bias -> softmax prob exactly 0.
    B3 = jnp.full((1, Ap), _NEG_INF, jnp.float32).at[:, :A].set(b3.reshape(1, A))
    return (W1, B1, W2, B2, W3, B3)


# --------------------------------------------------------------------------
# VMEM budget (v5e 16 MiB default scoped, v7x 64 MiB physical / 32 MiB scoped)
# --------------------------------------------------------------------------
def _vmem_limit_bytes(TB, S, Hp, Ap, act_itemsize):
    blocks = (
        2 * TB * S * act_itemsize                      # x tile, double-buffered
        + 2 * TB * Ap * 4                              # out tile, double-buffered
        + 2 * (S * Hp + Hp * Hp + Hp * Ap) * act_itemsize  # resident weights
        + 2 * (2 * Hp + Ap) * 4                        # biases (f32)
    )
    temps = 4 * TB * max(Hp, Ap) * 4                   # h1/h2/logits/exp temporaries
    est = blocks + temps + (4 << 20)                   # slack
    return int(min(max(est, 16 << 20), 48 << 20))


# --------------------------------------------------------------------------
# Wrapper
# --------------------------------------------------------------------------
@functools.partial(
    jax.jit, static_argnames=("action_size", "compute_dtype", "batch_tile")
)
def policy_forward(x, padded_params, action_size, *, compute_dtype=jnp.float32,
                   batch_tile=None):
    """x: [B, state_size] f32, padded_params from pad_policy_params.

    Returns probs: [B, action_size] f32.
    """
    W1, B1, W2, B2, W3, B3 = padded_params
    B, S = x.shape
    Hp = W1.shape[1]
    Ap = W3.shape[1]

    # Batch tile: multiple of 8 sublanes (16 for bf16 activations), capped at 512.
    row_align = 16 if compute_dtype == jnp.bfloat16 else 8
    if batch_tile is None:
        batch_tile = min(512, _round_up(B, row_align))
    TB = _round_up(batch_tile, row_align)
    Bp = _round_up(B, TB)

    # Cast activations/weights once (halves DMA bytes on the bf16 path);
    # biases, accumulation and softmax stay f32.
    xk = x.astype(compute_dtype)
    if Bp != B:
        xk = jnp.pad(xk, ((0, Bp - B), (0, 0)))
    W1k, W2k, W3k = (w.astype(compute_dtype) for w in (W1, W2, W3))

    itemsize = jnp.dtype(compute_dtype).itemsize
    cost = pl.CostEstimate(
        flops=2 * Bp * (S * Hp + Hp * Hp + Hp * Ap),
        transcendentals=Bp * Ap,
        bytes_accessed=(Bp * S + S * Hp + Hp * Hp + Hp * Ap) * itemsize
        + (2 * Hp + Ap) * 4 + Bp * Ap * 4,
    )

    out = pl.pallas_call(
        policy_kernel,
        out_shape=jax.ShapeDtypeStruct((Bp, Ap), jnp.float32),
        grid=(Bp // TB,),
        in_specs=[
            pl.BlockSpec((TB, S), lambda i: (i, 0)),   # x: tiled over batch
            pl.BlockSpec((S, Hp), lambda i: (0, 0)),   # w1: VMEM-resident
            pl.BlockSpec((1, Hp), lambda i: (0, 0)),   # b1
            pl.BlockSpec((Hp, Hp), lambda i: (0, 0)),  # w2
            pl.BlockSpec((1, Hp), lambda i: (0, 0)),   # b2
            pl.BlockSpec((Hp, Ap), lambda i: (0, 0)),  # w3
            pl.BlockSpec((1, Ap), lambda i: (0, 0)),   # b3 (padded cols = -1e30)
        ],
        out_specs=pl.BlockSpec((TB, Ap), lambda i: (i, 0)),  # lane-dense output
        compiler_params=pltpu.CompilerParams(
            dimension_semantics=("parallel",),  # shard batch tiles on v7x 2 TCs
            vmem_limit_bytes=_vmem_limit_bytes(TB, S, Hp, Ap, itemsize),
        ),
        cost_estimate=cost,
    )(xk, W1k, B1, W2k, B2, W3k, B3)

    return out[:B, :action_size]


def policy_ref(x, params):
    # Pure-JAX reference (unpadded), mirrors the PyTorch forward exactly.
    w1, b1, w2, b2, w3, b3 = params
    h1 = jnp.maximum(x @ w1 + b1, 0.0)
    h2 = jnp.maximum(h1 @ w2 + b2, 0.0)
    return jax.nn.softmax(h2 @ w3 + b3, axis=1)


if __name__ == "__main__":
    state_size, action_size, hidden_size = 16, 8, 32
    batch = 8

    key = jax.random.PRNGKey(0)
    k_params, k_x = jax.random.split(key)
    params = init_policy_params(k_params, state_size, action_size, hidden_size)
    padded = pad_policy_params(params)  # pad once at init
    x = jax.random.normal(k_x, (batch, state_size), jnp.float32)

    ref = policy_ref(x, params)

    # f32 matmul path (exact-ish; approx reciprocal only)
    probs = policy_forward(x, padded, action_size)
    jax.block_until_ready(probs)
    assert probs.shape == (batch, action_size)
    assert jnp.allclose(jnp.sum(probs, axis=1), 1.0, atol=5e-3)
    assert jnp.allclose(probs, ref, atol=5e-3, rtol=5e-3)

    # bf16-input matmul path (v6e/v7x recommendation: bf16 in, f32 accumulate)
    probs_bf16 = policy_forward(x, padded, action_size, compute_dtype=jnp.bfloat16)
    jax.block_until_ready(probs_bf16)
    assert probs_bf16.shape == (batch, action_size)
    assert jnp.allclose(jnp.sum(probs_bf16, axis=1), 1.0, atol=5e-3)
    assert jnp.allclose(probs_bf16, ref, atol=3e-2, rtol=3e-2)

    print("KERNEL_OK")
</pallas_src>

<mosaic_0001>
module attributes {stable_mosaic.version = 11 : i64} {
  func.func @policy_kernel(%arg0: i32, %arg1: memref<8x16xf32, #tpu.memory_space<vmem>>, %arg2: memref<16x128xf32, #tpu.memory_space<vmem>>, %arg3: memref<1x128xf32, #tpu.memory_space<vmem>>, %arg4: memref<128x128xf32, #tpu.memory_space<vmem>>, %arg5: memref<1x128xf32, #tpu.memory_space<vmem>>, %arg6: memref<128x128xf32, #tpu.memory_space<vmem>>, %arg7: memref<1x128xf32, #tpu.memory_space<vmem>>, %arg8: memref<8x128xf32, #tpu.memory_space<vmem>>) attributes {dimension_semantics = [#tpu.dimension_semantics<parallel>], iteration_bounds = array<i64: 1>, scalar_prefetch = 0 : i64, scratch_operands = 0 : i64, tpu.core_type = #tpu.core_type<tc>, window_params = [{transform_indices = @transform_0, window_bounds = array<i64: 8, 16>}, {pipeline_mode = #tpu.pipeline_mode<synchronous>, transform_indices = @transform_1, window_bounds = array<i64: 16, 128>}, {pipeline_mode = #tpu.pipeline_mode<synchronous>, transform_indices = @transform_2, window_bounds = array<i64: 1, 128>}, {pipeline_mode = #tpu.pipeline_mode<synchronous>, transform_indices = @transform_3, window_bounds = array<i64: 128, 128>}, {pipeline_mode = #tpu.pipeline_mode<synchronous>, transform_indices = @transform_4, window_bounds = array<i64: 1, 128>}, {pipeline_mode = #tpu.pipeline_mode<synchronous>, transform_indices = @transform_5, window_bounds = array<i64: 128, 128>}, {pipeline_mode = #tpu.pipeline_mode<synchronous>, transform_indices = @transform_6, window_bounds = array<i64: 1, 128>}, {transform_indices = @transform_7, window_bounds = array<i64: 8, 128>}]} {
    %c0 = arith.constant 0 : index
    %c0_0 = arith.constant 0 : index
    %0 = vector.load %arg1[%c0, %c0_0] : memref<8x16xf32, #tpu.memory_space<vmem>>, vector<8x16xf32>
    %c0_1 = arith.constant 0 : index
    %c0_2 = arith.constant 0 : index
    %1 = vector.load %arg2[%c0_1, %c0_2] : memref<16x128xf32, #tpu.memory_space<vmem>>, vector<16x128xf32>
    %cst = arith.constant dense<0.000000e+00> : vector<8x128xf32>
    %2 = tpu.matmul %0, %1, %cst {dimension_numbers = #tpu.dot_dimension_numbers<[1], [0], [0], [1], [0, 0, 1, 1], [], []>} : vector<8x16xf32>, vector<16x128xf32>, vector<8x128xf32> -> vector<8x128xf32>
    %c0_3 = arith.constant 0 : index
    %c0_4 = arith.constant 0 : index
    %3 = vector.load %arg3[%c0_3, %c0_4] : memref<1x128xf32, #tpu.memory_space<vmem>>, vector<1x128xf32>
    %4 = vector.broadcast %3 : vector<1x128xf32> to vector<8x128xf32>
    %5 = arith.addf %2, %4 : vector<8x128xf32>
    %cst_5 = arith.constant 0.000000e+00 : f32
    %6 = vector.broadcast %cst_5 : f32 to vector<8x128xf32>
    %7 = arith.maximumf %5, %6 : vector<8x128xf32>
    %c0_6 = arith.constant 0 : index
    %c0_7 = arith.constant 0 : index
    %8 = vector.load %arg4[%c0_6, %c0_7] : memref<128x128xf32, #tpu.memory_space<vmem>>, vector<128x128xf32>
    %cst_8 = arith.constant dense<0.000000e+00> : vector<8x128xf32>
    %9 = tpu.matmul %7, %8, %cst_8 {dimension_numbers = #tpu.dot_dimension_numbers<[1], [0], [0], [1], [0, 0, 1, 1], [], []>} : vector<8x128xf32>, vector<128x128xf32>, vector<8x128xf32> -> vector<8x128xf32>
    %c0_9 = arith.constant 0 : index
    %c0_10 = arith.constant 0 : index
    %10 = vector.load %arg5[%c0_9, %c0_10] : memref<1x128xf32, #tpu.memory_space<vmem>>, vector<1x128xf32>
    %11 = vector.broadcast %10 : vector<1x128xf32> to vector<8x128xf32>
    %12 = arith.addf %9, %11 : vector<8x128xf32>
    %cst_11 = arith.constant 0.000000e+00 : f32
    %13 = vector.broadcast %cst_11 : f32 to vector<8x128xf32>
    %14 = arith.maximumf %12, %13 : vector<8x128xf32>
    %c0_12 = arith.constant 0 : index
    %c0_13 = arith.constant 0 : index
    %15 = vector.load %arg6[%c0_12, %c0_13] : memref<128x128xf32, #tpu.memory_space<vmem>>, vector<128x128xf32>
    %cst_14 = arith.constant dense<0.000000e+00> : vector<8x128xf32>
    %16 = tpu.matmul %14, %15, %cst_14 {dimension_numbers = #tpu.dot_dimension_numbers<[1], [0], [0], [1], [0, 0, 1, 1], [], []>} : vector<8x128xf32>, vector<128x128xf32>, vector<8x128xf32> -> vector<8x128xf32>
    %c0_15 = arith.constant 0 : index
    %c0_16 = arith.constant 0 : index
    %17 = vector.load %arg7[%c0_15, %c0_16] : memref<1x128xf32, #tpu.memory_space<vmem>>, vector<1x128xf32>
    %18 = vector.broadcast %17 : vector<1x128xf32> to vector<8x128xf32>
    %19 = arith.addf %16, %18 : vector<8x128xf32>
    %cst_17 = arith.constant dense<0xFF800000> : vector<8xf32>
    %20 = vector.multi_reduction <maximumf>, %19, %cst_17 [1] : vector<8x128xf32> to vector<8xf32>
    %21 = vector.shape_cast %20 : vector<8xf32> to vector<8x1xf32>
    %22 = vector.broadcast %21 : vector<8x1xf32> to vector<8x128xf32>
    %23 = arith.subf %19, %22 : vector<8x128xf32>
    %24 = math.exp %23 : vector<8x128xf32>
    %cst_18 = arith.constant dense<0.000000e+00> : vector<8xf32>
    %25 = vector.multi_reduction <add>, %24, %cst_18 [1] : vector<8x128xf32> to vector<8xf32>
    %26 = vector.shape_cast %25 : vector<8xf32> to vector<8x1xf32>
    %27 = tpu.reciprocal %26 {approx = true} : vector<8x1xf32> -> vector<8x1xf32>
    %28 = vector.broadcast %27 : vector<8x1xf32> to vector<8x128xf32>
    %29 = arith.mulf %24, %28 : vector<8x128xf32>
    %c0_19 = arith.constant 0 : index
    %c0_20 = arith.constant 0 : index
    %30 = vector.load %arg8[%c0_19, %c0_20] : memref<8x128xf32, #tpu.memory_space<vmem>>, vector<8x128xf32>
    tpu.vector_store %arg8[%c0_19, %c0_20], %29 {strides = array<i32>} : memref<8x128xf32, #tpu.memory_space<vmem>>, vector<8x128xf32>,
    return
  }
  func.func @transform_0(%arg0: i32) -> (i32, i32) {
    %c0_i32 = arith.constant 0 : i32
    %c0_i32_0 = arith.constant 0 : i32
    return %arg0, %c0_i32 : i32, i32
  }
  func.func @transform_1(%arg0: i32) -> (i32, i32) {
    %c0_i32 = arith.constant 0 : i32
    %c0_i32_0 = arith.constant 0 : i32
    %c0_i32_1 = arith.constant 0 : i32
    return %c0_i32, %c0_i32_0 : i32, i32
  }
  func.func @transform_2(%arg0: i32) -> (i32, i32) {
    %c0_i32 = arith.constant 0 : i32
    %c0_i32_0 = arith.constant 0 : i32
    %c0_i32_1 = arith.constant 0 : i32
    return %c0_i32, %c0_i32_0 : i32, i32
  }
  func.func @transform_3(%arg0: i32) -> (i32, i32) {
    %c0_i32 = arith.constant 0 : i32
    %c0_i32_0 = arith.constant 0 : i32
    %c0_i32_1 = arith.constant 0 : i32
    return %c0_i32, %c0_i32_0 : i32, i32
  }
  func.func @transform_4(%arg0: i32) -> (i32, i32) {
    %c0_i32 = arith.constant 0 : i32
    %c0_i32_0 = arith.constant 0 : i32
    %c0_i32_1 = arith.constant 0 : i32
    return %c0_i32, %c0_i32_0 : i32, i32
  }
  func.func @transform_5(%arg0: i32) -> (i32, i32) {
    %c0_i32 = arith.constant 0 : i32
    %c0_i32_0 = arith.constant 0 : i32
    %c0_i32_1 = arith.constant 0 : i32
    return %c0_i32, %c0_i32_0 : i32, i32
  }
  func.func @transform_6(%arg0: i32) -> (i32, i32) {
    %c0_i32 = arith.constant 0 : i32
    %c0_i32_0 = arith.constant 0 : i32
    %c0_i32_1 = arith.constant 0 : i32
    return %c0_i32, %c0_i32_0 : i32, i32
  }
  func.func @transform_7(%arg0: i32) -> (i32, i32) {
    %c0_i32 = arith.constant 0 : i32
    %c0_i32_0 = arith.constant 0 : i32
    return %arg0, %c0_i32 : i32, i32
  }
}

</mosaic_0001>

<llo_original>
// kernel: policy_forward.1
$region0: #{policy_forward.1}
  #allocation0 [shape = 'u32[]', space=smem, size = 0x4, offset = 0x4, fixed_abs, tag = 'smem constant byte address 0x4 - core index']
  #allocation1 [shape = 'u32[144,128]{1,0:T(1,128)}', space=vmem, size = 0x12000, scoped, tag = 'internal scratch']
  %s0 = inlined_call_operand.hbm [shape: f32[8,16], index: 0, kind: input, shape index: {}]
  %s1 = inlined_call_operand.hbm [shape: f32[16,128], index: 1, kind: input, shape index: {}]
  %s2 = inlined_call_operand.vmem [shape: f32[1,128], index: 2, kind: input, shape index: {}]
  %s3 = inlined_call_operand.hbm [shape: f32[128,128], index: 3, kind: input, shape index: {}]
  %s4 = inlined_call_operand.vmem [shape: f32[1,128], index: 4, kind: input, shape index: {}]
  %s5 = inlined_call_operand.hbm [shape: f32[128,128], index: 5, kind: input, shape index: {}]
  %s6 = inlined_call_operand.vmem [shape: f32[1,128], index: 6, kind: input, shape index: {}]
  %s7 = inlined_call_operand.hbm [shape: f32[8,128], index: 7, kind: output, shape index: {}]
  %s8 = sld [smem:[#allocation0]]
  $region54: #{policy_forward.1} parent=0
    _
  %s10 = ssub.s32 1, %s8
  %s11 = scalar_select 0, %s10, %s8
  $region1: #{policy_forward.1} parent=0
    #allocation2 [shape = 'u8[4096]{0}', space=vmem, size = 0x1000, scoped, tag = 'input window, operand 0, single buffered']
    #allocation3 [shape = 's32[1]{0}', space=sflag, size = 0x4, scoped, tag = 'scoped memory for policy_forward.1']
    #allocation4 [shape = 's32[1]{0}', space=sflag, size = 0x4, scoped, tag = 'scoped memory for policy_forward.1']
    #allocation5 [shape = 'u8[8192]{0}', space=vmem, size = 0x2000, scoped, tag = 'input window, operand 1, single buffered']
    #allocation6 [shape = 's32[1]{0}', space=sflag, size = 0x4, scoped, tag = 'scoped memory for policy_forward.1']
    #allocation7 [shape = 'u8[65536]{0}', space=vmem, size = 0x10000, scoped, tag = 'input window, operand 3, single buffered']
    #allocation8 [shape = 'u8[65536]{0}', space=vmem, size = 0x10000, scoped, tag = 'input window, operand 5, single buffered']
    #allocation9 [shape = 's32[1]{0}', space=sflag, size = 0x4, scoped, tag = 'scoped memory for policy_forward.1']
    #allocation10 [shape = 'u8[4096]{0}', space=vmem, size = 0x1000, scoped, tag = 'output window, operand 0, single buffered']
    %12 = vsyncpa [#allocation3], 0
    %13 = vsyncpa [#allocation6], 0
    %14 = vsyncpa [#allocation9], 0
    %15 = vsyncpa [#allocation4], 0
    // Predicated region
    $region2: #{policy_forward.1} parent=1 // pred_check
      _
    $region3: #{policy_forward.1} parent=1 // pred_check_branch
      %17 = sbr.rel (0) target = $region5
    $region4: #{policy_forward.1} parent=1 // pred_region
      %s19 = ssub.s32 128, 128
      %20 = vsyncadd [#allocation3], %s19
      %s22 = sshll.u32 [#allocation2], 4
      %s23 = int_to_ptr.vmem [resolvable:$true] %s22
      %25 = dma.hbm_to_vmem [thread:$0]  %s0, 128, %s23, [#allocation3]
    $region5: #{policy_forward.1} parent=1 // pred_fallthru
      _
    // Predicated region
    $region6: #{policy_forward.1} parent=1 // pred_check
      _
    $region7: #{policy_forward.1} parent=1 // pred_check_branch
      %27 = sbr.rel (0) target = $region9
    $region8: #{policy_forward.1} parent=1 // pred_region
      %s29 = ssub.s32 256, 256
      %30 = vsyncadd [#allocation6], %s29
      %s31 = sshll.u32 [#allocation5], 4
      %s32 = int_to_ptr.vmem [resolvable:$true] %s31
      %37 = dma.hbm_to_vmem [thread:$0]  %s1, 256, %s32, [#allocation6], 128, 128, 8
    $region9: #{policy_forward.1} parent=1 // pred_fallthru
      _
    // Predicated region
    $region10: #{policy_forward.1} parent=1 // pred_check
      _
    $region11: #{policy_forward.1} parent=1 // pred_check_branch
      %39 = sbr.rel (0) target = $region13
    $region12: #{policy_forward.1} parent=1 // pred_region
      _
    $region13: #{policy_forward.1} parent=1 // pred_fallthru
      _
    // Predicated region
    $region14: #{policy_forward.1} parent=1 // pred_check
      _
    $region15: #{policy_forward.1} parent=1 // pred_check_branch
      %41 = sbr.rel (0) target = $region17
    $region16: #{policy_forward.1} parent=1 // pred_region
      %s43 = ssub.s32 2048, 2048
      %44 = vsyncadd [#allocation6], %s43
      %s45 = sshll.u32 [#allocation7], 4
      %s46 = int_to_ptr.vmem [resolvable:$true] %s45
      %51 = dma.hbm_to_vmem [thread:$0]  %s3, 2048, %s46, [#allocation6], 128, 128, 8
    $region17: #{policy_forward.1} parent=1 // pred_fallthru
      _
    // Predicated region
    $region18: #{policy_forward.1} parent=1 // pred_check
      _
    $region19: #{policy_forward.1} parent=1 // pred_check_branch
      %53 = sbr.rel (0) target = $region21
    $region20: #{policy_forward.1} parent=1 // pred_region
      _
    $region21: #{policy_forward.1} parent=1 // pred_fallthru
      _
    // Predicated region
    $region22: #{policy_forward.1} parent=1 // pred_check
      _
    $region23: #{policy_forward.1} parent=1 // pred_check_branch
      %55 = sbr.rel (0) target = $region25
    $region24: #{policy_forward.1} parent=1 // pred_region
      %s57 = ssub.s32 2048, 2048
      %58 = vsyncadd [#allocation9], %s57
      %s59 = sshll.u32 [#allocation8], 4
      %s60 = int_to_ptr.vmem [resolvable:$true] %s59
      %65 = dma.hbm_to_vmem [thread:$0]  %s5, 2048, %s60, [#allocation9], 128, 128, 8
    $region25: #{policy_forward.1} parent=1 // pred_fallthru
      _
    // Predicated region
    $region26: #{policy_forward.1} parent=1 // pred_check
      _
    $region27: #{policy_forward.1} parent=1 // pred_check_branch
      %67 = sbr.rel (0) target = $region29
    $region28: #{policy_forward.1} parent=1 // pred_region
      _
    $region29: #{policy_forward.1} parent=1 // pred_fallthru
      _
    // Predicated region
    $region30: #{policy_forward.1} parent=1 // pred_check
      _
    $region31: #{policy_forward.1} parent=1 // pred_check_branch
      %69 = sbr.rel (0) target = $region33
    $region32: #{policy_forward.1} parent=1 // pred_region
      %70 = dma.done [#allocation3], 128
    $region33: #{policy_forward.1} parent=1 // pred_fallthru
      _
    // Predicated region
    $region34: #{policy_forward.1} parent=1 // pred_check
      _
    $region35: #{policy_forward.1} parent=1 // pred_check_branch
      %72 = sbr.rel (0) target = $region37
    $region36: #{policy_forward.1} parent=1 // pred_region
      %73 = dma.done [#allocation6], 256
    $region37: #{policy_forward.1} parent=1 // pred_fallthru
      _
    // Predicated region
    $region38: #{policy_forward.1} parent=1 // pred_check
      _
    $region39: #{policy_forward.1} parent=1 // pred_check_branch
      %75 = sbr.rel (0) target = $region41
    $region40: #{policy_forward.1} parent=1 // pred_region
      %76 = dma.done [#allocation6], 2048
    $region41: #{policy_forward.1} parent=1 // pred_fallthru
      _
    // Predicated region
    $region42: #{policy_forward.1} parent=1 // pred_check
      _
    $region43: #{policy_forward.1} parent=1 // pred_check_branch
      %78 = sbr.rel (0) target = $region45
    $region44: #{policy_forward.1} parent=1 // pred_region
      %79 = dma.done [#allocation9], 2048
    $region45: #{policy_forward.1} parent=1 // pred_fallthru
      _
    %v80 = vld [vmem:[#allocation2] sm:$0xff]
    %v81 = vld [vmem:[#allocation5] sm:$0xff]
    %v82 = vld [vmem:[#allocation5 + $0x8] sm:$0xff]
    %v83 = vld [vmem:[%s2] sm:$0x1]
    %v85 = vlaneseq
    %v86 = vshrl.u32 %v85, 7
    %v87 = vsub.s32 0, %v86
    %v88 = vrot.slane %v83, %v87
    %vm90 = vcmask 130048
    %v92 = vsel %vm90, %v80, 0
    %94 = vmatprep.subr.mxu0 0.0
    %95 = vmatpush1.msra.mxu0 0.0
    %96 = vmatprep.subr.mxu0 0.0
    %97 = vmatpush1.msra.mxu0 0.0
    %98 = vmatprep.subr.mxu0 0.0
    %99 = vmatpush1.msra.mxu0 0.0
    %100 = vmatprep.subr.mxu0 0.0
    %101 = vmatpush1.msra.mxu0 0.0
    %102 = vmatprep.subr.mxu0 0.0
    %103 = vmatpush1.msra.mxu0 0.0
    %104 = vmatprep.subr.mxu0 0.0
    %105 = vmatpush1.msra.mxu0 0.0
    %106 = vmatprep.subr.mxu0 0.0
    %107 = vmatpush1.msra.mxu0 0.0
    %108 = vmatprep.subr.mxu0 0.0
    %109 = vmatpush1.msra.mxu0 0.0
    %110 = vmatprep.subr.mxu0 0.0
    %111 = vmatpush1.msra.mxu0 0.0
    %112 = vmatprep.subr.mxu0 0.0
    %113 = vmatpush1.msra.mxu0 0.0
    %114 = vmatprep.subr.mxu0 0.0
    %115 = vmatpush1.msra.mxu0 0.0
    %116 = vmatprep.subr.mxu0 0.0
    %117 = vmatpush1.msra.mxu0 0.0
    %118 = vmatprep.subr.mxu0 0.0
    %119 = vmatpush1.msra.mxu0 0.0
    %120 = vmatprep.subr.mxu0 0.0
    %121 = vmatpush1.msra.mxu0 0.0
    %122 = vmatprep.subr.mxu0 0.0
    %123 = vmatpush1.msra.mxu0 %v82
    %124 = vmatprep.subr.mxu0 0.0
    %125 = vmatpush1.msra.mxu0 %v81
    %126 = vmatprep.subr.mxu0 0.0
    %127 = vmatpush2.msra.mxu0 0.0
    %128 = vmatprep.subr.mxu0 0.0
    %129 = vmatpush2.msra.mxu0 0.0
    %130 = vmatprep.subr.mxu0 0.0
    %131 = vmatpush2.msra.mxu0 0.0
    %132 = vmatprep.subr.mxu0 0.0
    %133 = vmatpush2.msra.mxu0 0.0
    %134 = vmatprep.subr.mxu0 0.0
    %135 = vmatpush2.msra.mxu0 0.0
    %136 = vmatprep.subr.mxu0 0.0
    %137 = vmatpush2.msra.mxu0 0.0
    %138 = vmatprep.subr.mxu0 0.0
    %139 = vmatpush2.msra.mxu0 0.0
    %140 = vmatprep.subr.mxu0 0.0
    %141 = vmatpush2.msra.mxu0 0.0
    %142 = vmatprep.subr.mxu0 0.0
    %143 = vmatpush2.msra.mxu0 0.0
    %144 = vmatprep.subr.mxu0 0.0
    %145 = vmatpush2.msra.mxu0 0.0
    %146 = vmatprep.subr.mxu0 0.0
    %147 = vmatpush2.msra.mxu0 0.0
    %148 = vmatprep.subr.mxu0 0.0
    %149 = vmatpush2.msra.mxu0 0.0
    %150 = vmatprep.subr.mxu0 0.0
    %151 = vmatpush2.msra.mxu0 0.0
    %152 = vmatprep.subr.mxu0 0.0
    %153 = vmatpush2.msra.mxu0 0.0
    %154 = vmatprep.subr.mxu0 0.0
    %155 = vmatpush2.msra.mxu0 0.0
    %156 = vmatprep.subr.mxu0 0.0
    %157 = vmatpush2.msra.mxu0 0.0
    %158 = vmatprep.mubr.f32.mxu0 0.0
    %159 = vmatmul.mubr.f32.gmra.mxu0 %v92
    %v160 = vpop.f32.mrf.mxu0
    %v161 = vadd.f32 %v88, %v160
    %v162 = vpop.f32.mrf.mxu0
    %163 = vdwg.mxu0
    %v164 = vmax.f32 %v161, 0.0
    %v165 = vld [vmem:[#allocation7] sm:$0xff]
    %v166 = vld [vmem:[#allocation7 + $0x8] sm:$0xff]
    %v167 = vld [vmem:[#allocation7 + $0x10] sm:$0xff]
    %v168 = vld [vmem:[#allocation7 + $0x18] sm:$0xff]
    %v169 = vld [vmem:[#allocation7 + $0x20] sm:$0xff]
    %v170 = vld [vmem:[#allocation7 + $0x28] sm:$0xff]
    %v171 = vld [vmem:[#allocation7 + $0x30] sm:$0xff]
    %v172 = vld [vmem:[#allocation7 + $0x38] sm:$0xff]
    %v173 = vld [vmem:[#allocation7 + $0x40] sm:$0xff]
    %v174 = vld [vmem:[#allocation7 + $0x48] sm:$0xff]
    %v175 = vld [vmem:[#allocation7 + $0x50] sm:$0xff]
    %v176 = vld [vmem:[#allocation7 + $0x58] sm:$0xff]
    %v177 = vld [vmem:[#allocation7 + $0x60] sm:$0xff]
    %v178 = vld [vmem:[#allocation7 + $0x68] sm:$0xff]
    %v179 = vld [vmem:[#allocation7 + $0x70] sm:$0xff]
    %v180 = vld [vmem:[#allocation7 + $0x78] sm:$0xff]
    %v181 = vld [vmem:[%s4] sm:$0x1]
    %v183 = vlaneseq
    %v184 = vshrl.u32 %v183, 7
    %v185 = vsub.s32 0, %v184
    %v186 = vrot.slane %v181, %v185
    %188 = vmatprep.subr.mxu0 0.0
    %189 = vmatpush1.msra.mxu0 %v180
    %190 = vmatprep.subr.mxu0 0.0
    %191 = vmatpush1.msra.mxu0 %v179
    %192 = vmatprep.subr.mxu0 0.0
    %193 = vmatpush1.msra.mxu0 %v178
    %194 = vmatprep.subr.mxu0 0.0
    %195 = vmatpush1.msra.mxu0 %v177
    %196 = vmatprep.subr.mxu0 0.0
    %197 = vmatpush1.msra.mxu0 %v176
    %198 = vmatprep.subr.mxu0 0.0
    %199 = vmatpush1.msra.mxu0 %v175
    %200 = vmatprep.subr.mxu0 0.0
    %201 = vmatpush1.msra.mxu0 %v174
    %202 = vmatprep.subr.mxu0 0.0
    %203 = vmatpush1.msra.mxu0 %v173
    %204 = vmatprep.subr.mxu0 0.0
    %205 = vmatpush1.msra.mxu0 %v172
    %206 = vmatprep.subr.mxu0 0.0
    %207 = vmatpush1.msra.mxu0 %v171
    %208 = vmatprep.subr.mxu0 0.0
    %209 = vmatpush1.msra.mxu0 %v170
    %210 = vmatprep.subr.mxu0 0.0
    %211 = vmatpush1.msra.mxu0 %v169
    %212 = vmatprep.subr.mxu0 0.0
    %213 = vmatpush1.msra.mxu0 %v168
    %214 = vmatprep.subr.mxu0 0.0
    %215 = vmatpush1.msra.mxu0 %v167
    %216 = vmatprep.subr.mxu0 0.0
    %217 = vmatpush1.msra.mxu0 %v166
    %218 = vmatprep.subr.mxu0 0.0
    %219 = vmatpush1.msra.mxu0 %v165
    %220 = vmatprep.subr.mxu0 0.0
    %221 = vmatpush2.msra.mxu0 0.0
    %222 = vmatprep.subr.mxu0 0.0
    %223 = vmatpush2.msra.mxu0 0.0
    %224 = vmatprep.subr.mxu0 0.0
    %225 = vmatpush2.msra.mxu0 0.0
    %226 = vmatprep.subr.mxu0 0.0
    %227 = vmatpush2.msra.mxu0 0.0
    %228 = vmatprep.subr.mxu0 0.0
    %229 = vmatpush2.msra.mxu0 0.0
    %230 = vmatprep.subr.mxu0 0.0
    %231 = vmatpush2.msra.mxu0 0.0
    %232 = vmatprep.subr.mxu0 0.0
    %233 = vmatpush2.msra.mxu0 0.0
    %234 = vmatprep.subr.mxu0 0.0
    %235 = vmatpush2.msra.mxu0 0.0
    %236 = vmatprep.subr.mxu0 0.0
    %237 = vmatpush2.msra.mxu0 0.0
    %238 = vmatprep.subr.mxu0 0.0
    %239 = vmatpush2.msra.mxu0 0.0
    %240 = vmatprep.subr.mxu0 0.0
    %241 = vmatpush2.msra.mxu0 0.0
    %242 = vmatprep.subr.mxu0 0.0
    %243 = vmatpush2.msra.mxu0 0.0
    %244 = vmatprep.subr.mxu0 0.0
    %245 = vmatpush2.msra.mxu0 0.0
    %246 = vmatprep.subr.mxu0 0.0
    %247 = vmatpush2.msra.mxu0 0.0
    %248 = vmatprep.subr.mxu0 0.0
    %249 = vmatpush2.msra.mxu0 0.0
    %250 = vmatprep.subr.mxu0 0.0
    %251 = vmatpush2.msra.mxu0 0.0
    %252 = vmatprep.mubr.f32.mxu0 0.0
    %253 = vmatmul.mubr.f32.gmra.mxu0 %v164
    %v254 = vpop.f32.mrf.mxu0
    %v255 = vadd.f32 %v186, %v254
    %v256 = vpop.f32.mrf.mxu0
    %257 = vdwg.mxu0
    %v258 = vmax.f32 %v255, 0.0
    %v259 = vld [vmem:[#allocation8] sm:$0xff]
    %v260 = vld [vmem:[#allocation8 + $0x8] sm:$0xff]
    %v261 = vld [vmem:[#allocation8 + $0x10] sm:$0xff]
    %v262 = vld [vmem:[#allocation8 + $0x18] sm:$0xff]
    %v263 = vld [vmem:[#allocation8 + $0x20] sm:$0xff]
    %v264 = vld [vmem:[#allocation8 + $0x28] sm:$0xff]
    %v265 = vld [vmem:[#allocation8 + $0x30] sm:$0xff]
    %v266 = vld [vmem:[#allocation8 + $0x38] sm:$0xff]
    %v267 = vld [vmem:[#allocation8 + $0x40] sm:$0xff]
    %v268 = vld [vmem:[#allocation8 + $0x48] sm:$0xff]
    %v269 = vld [vmem:[#allocation8 + $0x50] sm:$0xff]
    %v270 = vld [vmem:[#allocation8 + $0x58] sm:$0xff]
    %v271 = vld [vmem:[#allocation8 + $0x60] sm:$0xff]
    %v272 = vld [vmem:[#allocation8 + $0x68] sm:$0xff]
    %v273 = vld [vmem:[#allocation8 + $0x70] sm:$0xff]
    %v274 = vld [vmem:[#allocation8 + $0x78] sm:$0xff]
    %v275 = vld [vmem:[%s6] sm:$0x1]
    %v277 = vlaneseq
    %v278 = vshrl.u32 %v277, 7
    %v279 = vsub.s32 0, %v278
    %v280 = vrot.slane %v275, %v279
    %282 = vmatprep.subr.mxu0 0.0
    %283 = vmatpush1.msra.mxu0 %v274
    %284 = vmatprep.subr.mxu0 0.0
    %285 = vmatpush1.msra.mxu0 %v273
    %286 = vmatprep.subr.mxu0 0.0
    %287 = vmatpush1.msra.mxu0 %v272
    %288 = vmatprep.subr.mxu0 0.0
    %289 = vmatpush1.msra.mxu0 %v271
    %290 = vmatprep.subr.mxu0 0.0
    %291 = vmatpush1.msra.mxu0 %v270
    %292 = vmatprep.subr.mxu0 0.0
    %293 = vmatpush1.msra.mxu0 %v269
    %294 = vmatprep.subr.mxu0 0.0
    %295 = vmatpush1.msra.mxu0 %v268
    %296 = vmatprep.subr.mxu0 0.0
    %297 = vmatpush1.msra.mxu0 %v267
    %298 = vmatprep.subr.mxu0 0.0
    %299 = vmatpush1.msra.mxu0 %v266
    %300 = vmatprep.subr.mxu0 0.0
    %301 = vmatpush1.msra.mxu0 %v265
    %302 = vmatprep.subr.mxu0 0.0
    %303 = vmatpush1.msra.mxu0 %v264
    %304 = vmatprep.subr.mxu0 0.0
    %305 = vmatpush1.msra.mxu0 %v263
    %306 = vmatprep.subr.mxu0 0.0
    %307 = vmatpush1.msra.mxu0 %v262
    %308 = vmatprep.subr.mxu0 0.0
    %309 = vmatpush1.msra.mxu0 %v261
    %310 = vmatprep.subr.mxu0 0.0
    %311 = vmatpush1.msra.mxu0 %v260
    %312 = vmatprep.subr.mxu0 0.0
    %313 = vmatpush1.msra.mxu0 %v259
    %314 = vmatprep.subr.mxu0 0.0
    %315 = vmatpush2.msra.mxu0 0.0
    %316 = vmatprep.subr.mxu0 0.0
    %317 = vmatpush2.msra.mxu0 0.0
    %318 = vmatprep.subr.mxu0 0.0
    %319 = vmatpush2.msra.mxu0 0.0
    %320 = vmatprep.subr.mxu0 0.0
    %321 = vmatpush2.msra.mxu0 0.0
    %322 = vmatprep.subr.mxu0 0.0
    %323 = vmatpush2.msra.mxu0 0.0
    %324 = vmatprep.subr.mxu0 0.0
    %325 = vmatpush2.msra.mxu0 0.0
    %326 = vmatprep.subr.mxu0 0.0
    %327 = vmatpush2.msra.mxu0 0.0
    %328 = vmatprep.subr.mxu0 0.0
    %329 = vmatpush2.msra.mxu0 0.0
    %330 = vmatprep.subr.mxu0 0.0
    %331 = vmatpush2.msra.mxu0 0.0
    %332 = vmatprep.subr.mxu0 0.0
    %333 = vmatpush2.msra.mxu0 0.0
    %334 = vmatprep.subr.mxu0 0.0
    %335 = vmatpush2.msra.mxu0 0.0
    %336 = vmatprep.subr.mxu0 0.0
    %337 = vmatpush2.msra.mxu0 0.0
    %338 = vmatprep.subr.mxu0 0.0
    %339 = vmatpush2.msra.mxu0 0.0
    %340 = vmatprep.subr.mxu0 0.0
    %341 = vmatpush2.msra.mxu0 0.0
    %342 = vmatprep.subr.mxu0 0.0
    %343 = vmatpush2.msra.mxu0 0.0
    %344 = vmatprep.subr.mxu0 0.0
    %345 = vmatpush2.msra.mxu0 0.0
    %346 = vmatprep.mubr.f32.mxu0 0.0
    %347 = vmatmul.mubr.f32.gmra.mxu0 %v258
    %v348 = vpop.f32.mrf.mxu0
    %v349 = vadd.f32 %v280, %v348
    %v350 = vpop.f32.mrf.mxu0
    %351 = vdwg.mxu0
    %352 = vmax.xlane.f32.xlu0 %v349
    %v353 = vpop.xlane.xlu0 %352
    %v354 = vsub.f32 %v349, %v353
    %v355 = vmul.f32 %v354, 1.442695
    %v356 = vpow.pop %v355
    %357 = vadd.xlane.f32.xlu0 %v356
    %v358 = vpop.xlane.xlu0 %357
    %v359 = vrcp.pop %v358
    %v360 = vmul.f32 %v356, %v359
    %361 = vst [vmem:[#allocation10] sm:$0xff] %v360
    // Predicated region
    $region46: #{policy_forward.1} parent=1 // pred_check
      _
    $region47: #{policy_forward.1} parent=1 // pred_check_branch
      %363 = sbr.rel (0) target = $region49
    $region48: #{policy_forward.1} parent=1 // pred_region
      %s365 = ssub.s32 128, 128
      %366 = vsyncadd [#allocation4], %s365
      %s368 = sshll.u32 [#allocation10], 4
      %s369 = int_to_ptr.vmem [resolvable:$true] %s368
      %371 = dma.vmem_to_hbm [thread:$0]  %s369, 128, %s7, [#allocation4]
    $region49: #{policy_forward.1} parent=1 // pred_fallthru
      _
    // Predicated region
    $region50: #{policy_forward.1} parent=1 // pred_check
      _
    $region51: #{policy_forward.1} parent=1 // pred_check_branch
      %373 = sbr.rel (0) target = $region53
    $region52: #{policy_forward.1} parent=1 // pred_region
      %374 = dma.done [#allocation4], 128
    $region53: #{policy_forward.1} parent=1 // pred_fallthru
      _
    %375 = vsyncpa [#allocation3], 1
    %376 = vsyncpa [#allocation6], 1
    %377 = vsyncpa [#allocation9], 1
    %378 = vsyncpa [#allocation4], 1

</llo_original>
